<compile_context>
chip_gen: v5e
topology: v5e:2x2
jax: 0.10.0
libtpu: 0.0.40
codegen_flags: <defaults>
</compile_context>

<pallas_src>
import math
import jax
import jax.numpy as jnp
from jax.experimental import pallas as pl
from jax.experimental.pallas import tpu as pltpu


# ----------------------------- kernel ---------------------------------------


def decoder_kernel(x_ref, w1_ref, w2_ref, out_ref):
    # Layer 1: bf16 matmul, f32 accumulation; biases already folded into W1
    # via the ones column of x.  ReLU on the VPU in f32.
    h = jnp.maximum(
        jnp.dot(x_ref[...], w1_ref[...], preferred_element_type=jnp.float32),
        0.0,
    )
    # Layer 2: the constant-1 hidden unit row of W2 carries b2.  Cast back to
    # bf16 only for the MXU; the store stays f32 (128-lane dense).
    out_ref[...] = jnp.dot(
        h.astype(w2_ref.dtype), w2_ref[...],
        preferred_element_type=jnp.float32,
    ).astype(out_ref.dtype)


# ----------------------------- wrapper ---------------------------------------


def _round_up(n, m):
    return ((n + m - 1) // m) * m


def _device_kind():
    try:
        return jax.devices()[0].device_kind.lower()
    except Exception:  # pragma: no cover - be robust to odd environments
        return ""


def _select_row_tile(batch):
    """Generation- and batch-aware row tile (multiple of 8 sublanes)."""
    kind = _device_kind()
    is_v5 = "v5" in kind
    is_v7 = "v7" in kind
    base = 128 if is_v5 else 256          # v5e MXU is 4x128x128; v6e/v7x 2x256x256
    cap = 512 if is_v5 else 1024          # VMEM at TM=1024 is ~1.3 MB -> fine everywhere
    bp8 = _round_up(max(batch, 1), 8)

    # Tiny batches: one tile exactly covering the (8-padded) batch.
    if bp8 <= base and not (is_v7 and bp8 >= 2 * 128):
        return bp8

    candidates = [t for t in (128, 256, 512, 1024) if t <= cap]

    def cost(tm):
        bp = _round_up(bp8, tm)
        steps = bp // tm
        pad = bp - bp8
        # On v7x prefer >=2 grid steps so both TensorCores get work.
        single_core_penalty = 1 if (is_v7 and steps < 2 and bp8 >= 2 * 128) else 0
        return (pad, single_core_penalty, steps)

    return min(candidates, key=cost)


def decoder_forward(z, c, params, out_dim):
    """z: [B, z_dim], c: [B, c_bits] -> [B, out_dim] (float32)."""
    w1, w2 = params                      # w1: [KP, HP] bf16, w2: [HP, OP] bf16
    B = z.shape[0]
    k_in = z.shape[1] + c.shape[1]
    KP, HP = w1.shape
    OP = w2.shape[1]

    # Concat + ones column (bias folding) + pad contraction dim to KP.
    x = jnp.concatenate([z, c, jnp.ones((B, 1), z.dtype)], axis=1)
    if KP > k_in + 1:
        x = jnp.pad(x, ((0, 0), (0, KP - k_in - 1)))
    x = x.astype(w1.dtype)

    # Batch padding / row tile.
    TM = _select_row_tile(B)
    BP = _round_up(_round_up(B, 8), TM)
    if BP != B:
        x = jnp.pad(x, ((0, BP - B), (0, 0)))

    grid = (BP // TM,)

    cost = pl.CostEstimate(
        flops=2 * BP * (KP * HP + HP * OP),
        transcendentals=0,
        bytes_accessed=(x.size * x.dtype.itemsize
                        + w1.size * w1.dtype.itemsize
                        + w2.size * w2.dtype.itemsize
                        + BP * OP * 4),
    )

    out_padded = pl.pallas_call(
        decoder_kernel,
        out_shape=jax.ShapeDtypeStruct((BP, OP), jnp.float32),
        grid=grid,
        in_specs=[
            pl.BlockSpec((TM, KP), lambda i: (i, 0)),    # x rows, tiled over batch
            pl.BlockSpec((KP, HP), lambda i: (0, 0)),    # W1 (+ folded b1) resident
            pl.BlockSpec((HP, OP), lambda i: (0, 0)),    # W2 (+ folded b2) resident
        ],
        out_specs=pl.BlockSpec((TM, OP), lambda i: (i, 0)),
        compiler_params=pltpu.CompilerParams(
            dimension_semantics=("parallel",)),
        cost_estimate=cost,
    )(x, w1, w2)

    # TODO(synk): downstream consumers could read the padded (BP, OP) f32 (or
    # bf16) buffer directly to avoid this slice copy / writeback amplification.
    return out_padded[:B, :out_dim]


# ----------------------------- params ---------------------------------------


def init_params(key, z_dim, c_bits, hidden, out_dim):
    """nn.Linear-style init, packed with folded biases and padded widths.

    Layout:
      W1p: [KP, HP] bf16 where KP = round_up(in1 + 1, 32), HP = round_up(hidden+1, 128)
           rows 0..in1-1  = W1^T, row in1 = b1 (the ones-column row),
           column `hidden` = constant-1 unit (only row in1 set to 1).
      W2p: [HP, OP] bf16 where OP = round_up(out_dim, 128)
           rows 0..hidden-1 = W2^T, row `hidden` = b2, rest zero.
    Zero padding is exact; padded output columns are sliced off in the wrapper.
    """
    k1, k2, k3, k4 = jax.random.split(key, 4)
    in1 = z_dim + c_bits
    KP = _round_up(in1 + 1, 32)
    HP = _round_up(hidden + 1, 128)
    OP = _round_up(out_dim, 128)

    bound1 = 1.0 / math.sqrt(in1)
    w1 = jax.random.uniform(k1, (in1, hidden), jnp.float32, -bound1, bound1)
    b1 = jax.random.uniform(k2, (hidden,), jnp.float32, -bound1, bound1)
    bound2 = 1.0 / math.sqrt(hidden)
    w2 = jax.random.uniform(k3, (hidden, out_dim), jnp.float32, -bound2, bound2)
    b2 = jax.random.uniform(k4, (out_dim,), jnp.float32, -bound2, bound2)

    w1p = jnp.zeros((KP, HP), jnp.float32)
    w1p = w1p.at[:in1, :hidden].set(w1)
    w1p = w1p.at[in1, :hidden].set(b1)      # ones column row carries b1
    w1p = w1p.at[in1, hidden].set(1.0)      # constant-1 hidden unit -> relu(1)=1

    w2p = jnp.zeros((HP, OP), jnp.float32)
    w2p = w2p.at[:hidden, :out_dim].set(w2)
    w2p = w2p.at[hidden, :out_dim].set(b2)  # constant unit row carries b2

    return (w1p.astype(jnp.bfloat16), w2p.astype(jnp.bfloat16))


def decoder_reference(z, c, params, out_dim):
    """Pure-JAX reference replicating the kernel's bf16/f32 numerics."""
    w1, w2 = params
    B = z.shape[0]
    k_in = z.shape[1] + c.shape[1]
    KP = w1.shape[0]
    x = jnp.concatenate([z, c, jnp.ones((B, 1), z.dtype)], axis=1)
    if KP > k_in + 1:
        x = jnp.pad(x, ((0, 0), (0, KP - k_in - 1)))
    x = x.astype(jnp.bfloat16)
    h = jnp.maximum(jnp.dot(x, w1, preferred_element_type=jnp.float32), 0.0)
    y = jnp.dot(h.astype(jnp.bfloat16), w2, preferred_element_type=jnp.float32)
    return y[:, :out_dim]


# ----------------------------- self-test -------------------------------------


if __name__ == "__main__":
    # Module hyperparameters (small, consistent with the forward):
    #   inp_size = (32,), z = 16, c_size = 10, c_type='binary'
    #   -> c_bits = ceil(log2(10)) = 4, first Linear in-features = 20
    inp_dim = 32
    z_dim = 16
    c_size = 10
    c_bits = math.ceil(math.log2(c_size))  # 4
    hidden = 100
    batch = 8

    key = jax.random.PRNGKey(0)
    kz, kc, kp = jax.random.split(key, 3)
    z = jax.random.normal(kz, (batch, z_dim), jnp.float32)
    c = jax.random.bernoulli(kc, 0.5, (batch, c_bits)).astype(jnp.float32)
    params = init_params(kp, z_dim, c_bits, hidden, inp_dim)

    out = jax.block_until_ready(decoder_forward(z, c, params, inp_dim))
    ref = decoder_reference(z, c, params, inp_dim)
    assert out.shape == (batch, inp_dim), out.shape
    assert jnp.allclose(out, ref, atol=1e-3, rtol=1e-3), float(
        jnp.max(jnp.abs(out - ref)))

    # Second run with a larger, non-aligned batch to exercise the multi-step
    # grid / batch-padding path.
    batch2 = 300
    kz2, kc2 = jax.random.split(jax.random.PRNGKey(1))
    z2 = jax.random.normal(kz2, (batch2, z_dim), jnp.float32)
    c2 = jax.random.bernoulli(kc2, 0.5, (batch2, c_bits)).astype(jnp.float32)
    out2 = jax.block_until_ready(decoder_forward(z2, c2, params, inp_dim))
    ref2 = decoder_reference(z2, c2, params, inp_dim)
    assert out2.shape == (batch2, inp_dim), out2.shape
    assert jnp.allclose(out2, ref2, atol=1e-3, rtol=1e-3), float(
        jnp.max(jnp.abs(out2 - ref2)))

    print("KERNEL_OK")
</pallas_src>

<mosaic_0001>
module attributes {stable_mosaic.version = 11 : i64} {
  func.func @decoder_kernel(%arg0: i32, %arg1: memref<8x32xbf16, #tpu.memory_space<vmem>>, %arg2: memref<32x128xbf16, #tpu.memory_space<vmem>>, %arg3: memref<128x128xbf16, #tpu.memory_space<vmem>>, %arg4: memref<8x128xf32, #tpu.memory_space<vmem>>) attributes {dimension_semantics = [#tpu.dimension_semantics<parallel>], iteration_bounds = array<i64: 1>, scalar_prefetch = 0 : i64, scratch_operands = 0 : i64, tpu.core_type = #tpu.core_type<tc>, window_params = [{transform_indices = @transform_0, window_bounds = array<i64: 8, 32>}, {pipeline_mode = #tpu.pipeline_mode<synchronous>, transform_indices = @transform_1, window_bounds = array<i64: 32, 128>}, {pipeline_mode = #tpu.pipeline_mode<synchronous>, transform_indices = @transform_2, window_bounds = array<i64: 128, 128>}, {transform_indices = @transform_3, window_bounds = array<i64: 8, 128>}]} {
    %c0 = arith.constant 0 : index
    %c0_0 = arith.constant 0 : index
    %0 = vector.load %arg1[%c0, %c0_0] : memref<8x32xbf16, #tpu.memory_space<vmem>>, vector<8x32xbf16>
    %c0_1 = arith.constant 0 : index
    %c0_2 = arith.constant 0 : index
    %1 = vector.load %arg2[%c0_1, %c0_2] : memref<32x128xbf16, #tpu.memory_space<vmem>>, vector<32x128xbf16>
    %cst = arith.constant dense<0.000000e+00> : vector<8x128xf32>
    %2 = tpu.matmul %0, %1, %cst {dimension_numbers = #tpu.dot_dimension_numbers<[1], [0], [0], [1], [0, 0, 1, 1], [], []>} : vector<8x32xbf16>, vector<32x128xbf16>, vector<8x128xf32> -> vector<8x128xf32>
    %cst_3 = arith.constant 0.000000e+00 : f32
    %3 = vector.broadcast %cst_3 : f32 to vector<8x128xf32>
    %4 = arith.maximumf %2, %3 : vector<8x128xf32>
    %5 = arith.truncf %4 : vector<8x128xf32> to vector<8x128xbf16>
    %c0_4 = arith.constant 0 : index
    %c0_5 = arith.constant 0 : index
    %6 = vector.load %arg3[%c0_4, %c0_5] : memref<128x128xbf16, #tpu.memory_space<vmem>>, vector<128x128xbf16>
    %cst_6 = arith.constant dense<0.000000e+00> : vector<8x128xf32>
    %7 = tpu.matmul %5, %6, %cst_6 {dimension_numbers = #tpu.dot_dimension_numbers<[1], [0], [0], [1], [0, 0, 1, 1], [], []>} : vector<8x128xbf16>, vector<128x128xbf16>, vector<8x128xf32> -> vector<8x128xf32>
    %c0_7 = arith.constant 0 : index
    %c0_8 = arith.constant 0 : index
    %8 = vector.load %arg4[%c0_7, %c0_8] : memref<8x128xf32, #tpu.memory_space<vmem>>, vector<8x128xf32>
    tpu.vector_store %arg4[%c0_7, %c0_8], %7 {strides = array<i32>} : memref<8x128xf32, #tpu.memory_space<vmem>>, vector<8x128xf32>,
    return
  }
  func.func @transform_0(%arg0: i32) -> (i32, i32) {
    %c0_i32 = arith.constant 0 : i32
    %c0_i32_0 = arith.constant 0 : i32
    return %arg0, %c0_i32 : i32, i32
  }
  func.func @transform_1(%arg0: i32) -> (i32, i32) {
    %c0_i32 = arith.constant 0 : i32
    %c0_i32_0 = arith.constant 0 : i32
    %c0_i32_1 = arith.constant 0 : i32
    return %c0_i32, %c0_i32_0 : i32, i32
  }
  func.func @transform_2(%arg0: i32) -> (i32, i32) {
    %c0_i32 = arith.constant 0 : i32
    %c0_i32_0 = arith.constant 0 : i32
    %c0_i32_1 = arith.constant 0 : i32
    return %c0_i32, %c0_i32_0 : i32, i32
  }
  func.func @transform_3(%arg0: i32) -> (i32, i32) {
    %c0_i32 = arith.constant 0 : i32
    %c0_i32_0 = arith.constant 0 : i32
    return %arg0, %c0_i32 : i32, i32
  }
}

</mosaic_0001>

<llo_original>
// kernel: tpu_custom_call.1
$region0: #{tpu_custom_call.1}
  #allocation0 [shape = 'u32[]', space=smem, size = 0x4, offset = 0x4, fixed_abs, tag = 'smem constant byte address 0x4 - core index']
  #allocation1 [shape = 'u32[72,128]{1,0:T(1,128)}', space=vmem, size = 0x9000, scoped, tag = 'internal scratch']
  %s0 = inlined_call_operand.hbm [shape: bf16[8,32], index: 0, kind: input, shape index: {}]
  %s1 = inlined_call_operand.hbm [shape: bf16[32,128], index: 1, kind: input, shape index: {}]
  %s2 = inlined_call_operand.hbm [shape: bf16[128,128], index: 2, kind: input, shape index: {}]
  %s3 = inlined_call_operand.hbm [shape: f32[8,128], index: 3, kind: output, shape index: {}]
  %s4 = sld [smem:[#allocation0]]
  $region34: #{tpu_custom_call.1} parent=0
    _
  %s6 = ssub.s32 1, %s4
  %s7 = scalar_select 0, %s6, %s4
  $region1: #{tpu_custom_call.1} parent=0
    #allocation2 [shape = 'u8[2048]{0}', space=vmem, size = 0x800, scoped, tag = 'input window, operand 0, single buffered']
    #allocation3 [shape = 's32[1]{0}', space=sflag, size = 0x4, scoped, tag = 'scoped memory for tpu_custom_call.1']
    #allocation4 [shape = 's32[1]{0}', space=sflag, size = 0x4, scoped, tag = 'scoped memory for tpu_custom_call.1']
    #allocation5 [shape = 'u8[8192]{0}', space=vmem, size = 0x2000, scoped, tag = 'input window, operand 1, single buffered']
    #allocation6 [shape = 's32[1]{0}', space=sflag, size = 0x4, scoped, tag = 'scoped memory for tpu_custom_call.1']
    #allocation7 [shape = 'u8[32768]{0}', space=vmem, size = 0x8000, scoped, tag = 'input window, operand 2, single buffered']
    #allocation8 [shape = 'u8[4096]{0}', space=vmem, size = 0x1000, scoped, tag = 'output window, operand 0, single buffered']
    %8 = vsyncpa [#allocation3], 0
    %9 = vsyncpa [#allocation6], 0
    %10 = vsyncpa [#allocation4], 0
    // Predicated region
    $region2: #{tpu_custom_call.1} parent=1 // pred_check
      _
    $region3: #{tpu_custom_call.1} parent=1 // pred_check_branch
      %12 = sbr.rel (0) target = $region5
    $region4: #{tpu_custom_call.1} parent=1 // pred_region
      %14 = vsyncadd [#allocation3], 0
      %s16 = sshll.u32 %s0, 4
      %s17 = int_to_ptr.hbm [resolvable:$true] %s16
      %s18 = sshll.u32 [#allocation2], 4
      %s19 = int_to_ptr.vmem [resolvable:$true] %s18
      %21 = dma.hbm_to_vmem [thread:$0]  %s17, 64, %s19, [#allocation3]
    $region5: #{tpu_custom_call.1} parent=1 // pred_fallthru
      _
    // Predicated region
    $region6: #{tpu_custom_call.1} parent=1 // pred_check
      _
    $region7: #{tpu_custom_call.1} parent=1 // pred_check_branch
      %23 = sbr.rel (0) target = $region9
    $region8: #{tpu_custom_call.1} parent=1 // pred_region
      %25 = vsyncadd [#allocation6], 0
      %s26 = sshll.u32 %s1, 4
      %s27 = int_to_ptr.hbm [resolvable:$true] %s26
      %s28 = sshll.u32 [#allocation5], 4
      %s29 = int_to_ptr.vmem [resolvable:$true] %s28
      %34 = dma.hbm_to_vmem [thread:$0]  %s27, 256, %s29, [#allocation6], 64, 64, 4
    $region9: #{tpu_custom_call.1} parent=1 // pred_fallthru
      _
    // Predicated region
    $region10: #{tpu_custom_call.1} parent=1 // pred_check
      _
    $region11: #{tpu_custom_call.1} parent=1 // pred_check_branch
      %36 = sbr.rel (0) target = $region13
    $region12: #{tpu_custom_call.1} parent=1 // pred_region
      %38 = vsyncadd [#allocation6], 0
      %s39 = sshll.u32 %s2, 4
      %s40 = int_to_ptr.hbm [resolvable:$true] %s39
      %s41 = sshll.u32 [#allocation7], 4
      %s42 = int_to_ptr.vmem [resolvable:$true] %s41
      %47 = dma.hbm_to_vmem [thread:$0]  %s40, 1024, %s42, [#allocation6], 64, 64, 4
    $region13: #{tpu_custom_call.1} parent=1 // pred_fallthru
      _
    // Predicated region
    $region14: #{tpu_custom_call.1} parent=1 // pred_check
      _
    $region15: #{tpu_custom_call.1} parent=1 // pred_check_branch
      %49 = sbr.rel (0) target = $region17
    $region16: #{tpu_custom_call.1} parent=1 // pred_region
      %51 = dma.done [#allocation3], 64
    $region17: #{tpu_custom_call.1} parent=1 // pred_fallthru
      _
    // Predicated region
    $region18: #{tpu_custom_call.1} parent=1 // pred_check
      _
    $region19: #{tpu_custom_call.1} parent=1 // pred_check_branch
      %53 = sbr.rel (0) target = $region21
    $region20: #{tpu_custom_call.1} parent=1 // pred_region
      %55 = dma.done [#allocation6], 256
    $region21: #{tpu_custom_call.1} parent=1 // pred_fallthru
      _
    // Predicated region
    $region22: #{tpu_custom_call.1} parent=1 // pred_check
      _
    $region23: #{tpu_custom_call.1} parent=1 // pred_check_branch
      %57 = sbr.rel (0) target = $region25
    $region24: #{tpu_custom_call.1} parent=1 // pred_region
      %59 = dma.done [#allocation6], 1024
    $region25: #{tpu_custom_call.1} parent=1 // pred_fallthru
      _
    %v61 = vld [vmem:[#allocation2] sm:$0xf]
    %v62 = vld [vmem:[#allocation5] sm:$0xf]
    %v63 = vld [vmem:[#allocation5 + $0x4] sm:$0xf]
    %v64 = vld [vmem:[#allocation5 + $0x8] sm:$0xf]
    %v65 = vld [vmem:[#allocation5 + $0xc] sm:$0xf]
    %v70 = vunpack.c.l.b16 %v62
    %v71 = vunpack.c.l.b16 %v63
    %v72 = vunpack.c.l.b16 %v64
    %v73 = vunpack.c.l.b16 %v65
    %v74 = vpack.c.b16 %v71, %v70
    %v75 = vpack.c.b16 %v73, %v72
    %vm78 = vcmask 261120
    %v80 = vsel %vm78, %v61, 0
    %82 = vmatpush.bf16.msra.mxu0 0
    %83 = vmatpush.bf16.msra.mxu0 0
    %84 = vmatpush.bf16.msra.mxu0 0
    %85 = vmatpush.bf16.msra.mxu0 0
    %86 = vmatpush.bf16.msra.mxu0 0
    %87 = vmatpush.bf16.msra.mxu0 0
    %88 = vmatpush.bf16.msra.mxu0 %v75
    %89 = vmatpush.bf16.msra.mxu0 %v74
    %90 = vmatmul.bf16.gmra.mxu0 %v80
    %v91 = vpop.f32.mrf.mxu0
    %v92 = vadd.f32 0.0, %v91
    %v93 = vpop.f32.mrf.mxu0
    %94 = vdwg.mxu0
    %v95 = vmax.f32 %v92, 0.0
    %v96 = vpack.c.bf16 %v95, %v95
    %v97 = vld [vmem:[#allocation7] sm:$0xf]
    %v98 = vld [vmem:[#allocation7 + $0x4] sm:$0xf]
    %v99 = vld [vmem:[#allocation7 + $0x8] sm:$0xf]
    %v100 = vld [vmem:[#allocation7 + $0xc] sm:$0xf]
    %v101 = vld [vmem:[#allocation7 + $0x10] sm:$0xf]
    %v102 = vld [vmem:[#allocation7 + $0x14] sm:$0xf]
    %v103 = vld [vmem:[#allocation7 + $0x18] sm:$0xf]
    %v104 = vld [vmem:[#allocation7 + $0x1c] sm:$0xf]
    %v105 = vld [vmem:[#allocation7 + $0x20] sm:$0xf]
    %v106 = vld [vmem:[#allocation7 + $0x24] sm:$0xf]
    %v107 = vld [vmem:[#allocation7 + $0x28] sm:$0xf]
    %v108 = vld [vmem:[#allocation7 + $0x2c] sm:$0xf]
    %v109 = vld [vmem:[#allocation7 + $0x30] sm:$0xf]
    %v110 = vld [vmem:[#allocation7 + $0x34] sm:$0xf]
    %v111 = vld [vmem:[#allocation7 + $0x38] sm:$0xf]
    %v112 = vld [vmem:[#allocation7 + $0x3c] sm:$0xf]
    %v129 = vunpack.c.l.b16 %v97
    %v130 = vunpack.c.l.b16 %v98
    %v131 = vunpack.c.l.b16 %v99
    %v132 = vunpack.c.l.b16 %v100
    %v133 = vunpack.c.l.b16 %v101
    %v134 = vunpack.c.l.b16 %v102
    %v135 = vunpack.c.l.b16 %v103
    %v136 = vunpack.c.l.b16 %v104
    %v137 = vunpack.c.l.b16 %v105
    %v138 = vunpack.c.l.b16 %v106
    %v139 = vunpack.c.l.b16 %v107
    %v140 = vunpack.c.l.b16 %v108
    %v141 = vunpack.c.l.b16 %v109
    %v142 = vunpack.c.l.b16 %v110
    %v143 = vunpack.c.l.b16 %v111
    %v144 = vunpack.c.l.b16 %v112
    %v145 = vpack.c.b16 %v130, %v129
    %v146 = vpack.c.b16 %v132, %v131
    %v147 = vpack.c.b16 %v134, %v133
    %v148 = vpack.c.b16 %v136, %v135
    %v149 = vpack.c.b16 %v138, %v137
    %v150 = vpack.c.b16 %v140, %v139
    %v151 = vpack.c.b16 %v142, %v141
    %v152 = vpack.c.b16 %v144, %v143
    %161 = vmatpush.bf16.msra.mxu0 %v152
    %162 = vmatpush.bf16.msra.mxu0 %v151
    %163 = vmatpush.bf16.msra.mxu0 %v150
    %164 = vmatpush.bf16.msra.mxu0 %v149
    %165 = vmatpush.bf16.msra.mxu0 %v148
    %166 = vmatpush.bf16.msra.mxu0 %v147
    %167 = vmatpush.bf16.msra.mxu0 %v146
    %168 = vmatpush.bf16.msra.mxu0 %v145
    %169 = vmatmul.bf16.gmra.mxu0 %v96
    %v170 = vpop.f32.mrf.mxu0
    %v171 = vadd.f32 0.0, %v170
    %v172 = vpop.f32.mrf.mxu0
    %173 = vdwg.mxu0
    %174 = vst [vmem:[#allocation8] sm:$0xff] %v171
    // Predicated region
    $region26: #{tpu_custom_call.1} parent=1 // pred_check
      _
    $region27: #{tpu_custom_call.1} parent=1 // pred_check_branch
      %176 = sbr.rel (0) target = $region29
    $region28: #{tpu_custom_call.1} parent=1 // pred_region
      %178 = vsyncadd [#allocation4], 0
      %s180 = sshll.u32 [#allocation8], 4
      %s181 = int_to_ptr.vmem [resolvable:$true] %s180
      %s182 = sshll.u32 %s3, 4
      %s183 = int_to_ptr.hbm [resolvable:$true] %s182
      %185 = dma.vmem_to_hbm [thread:$0]  %s181, 128, %s183, [#allocation4]
    $region29: #{tpu_custom_call.1} parent=1 // pred_fallthru
      _
    // Predicated region
    $region30: #{tpu_custom_call.1} parent=1 // pred_check
      _
    $region31: #{tpu_custom_call.1} parent=1 // pred_check_branch
      %187 = sbr.rel (0) target = $region33
    $region32: #{tpu_custom_call.1} parent=1 // pred_region
      %189 = dma.done [#allocation4], 128
    $region33: #{tpu_custom_call.1} parent=1 // pred_fallthru
      _
    %190 = vsyncpa [#allocation3], 1
    %191 = vsyncpa [#allocation6], 1
    %192 = vsyncpa [#allocation4], 1

</llo_original>
